<compile_context>
chip_gen: v7x
topology: tpu7x:2x2x1
jax: 0.10.0
libtpu: 0.0.40
codegen_flags: <defaults>
</compile_context>

<pallas_src>
import jax
import jax.numpy as jnp
from jax.experimental import pallas as pl
from jax.experimental.pallas import tpu as pltpu

IN_FEATURES = 32 * 32          # 1024
HIDDEN = 100
HIDDEN_PAD = 128               # lane-aligned hidden dim
OUT = 10
OUT_PAD = 128                  # lane-aligned logits dim (compute only)
NEG_SLOPE = 0.1
MASK_VAL = -1e30               # bias for padded logit lanes -> exp underflows to 0

TB_MAX = 1024                  # max batch rows per grid step (~4 MiB f32 x tile)


def _round_up(x, m):
    return ((x + m - 1) // m) * m


def mlp_kernel(x_ref, w1_ref, b1_ref, w2_ref, b2_ref, o_ref):
    # x streams in as f32; cast to bf16 in-kernel for the MXU (f32 accumulate).
    x = x_ref[...].astype(jnp.bfloat16)                        # (TB, 1024)

    # Linear(1024 -> 128 padded).
    h = jnp.dot(x, w1_ref[...], preferred_element_type=jnp.float32)
    h = h + b1_ref[...]                                        # (TB, 128) f32

    # LeakyReLU(0.1); zero-padded hidden lanes stay exactly 0.
    h = jnp.where(h > 0, h, NEG_SLOPE * h)

    # Linear(128 -> 128 padded).
    logits = jnp.dot(h.astype(jnp.bfloat16), w2_ref[...],
                     preferred_element_type=jnp.float32)
    logits = logits + b2_ref[...]                              # padded lanes -> -1e30

    # Max-stabilized softmax; padded lanes underflow to exactly 0, so the
    # denominator is the sum over the 10 real lanes. Exact divide (DMA-bound
    # kernel -> free) keeps each row summing to 1 tightly.
    m = jnp.max(logits, axis=-1, keepdims=True)
    e = jnp.exp(logits - m)
    denom = jnp.sum(e, axis=-1, keepdims=True)
    o_ref[...] = e[:, :OUT] / denom                            # (TB, 10) store


@jax.jit
def custom_mlp_forward(img, w1, b1, w2, b2):
    """img: (B, 1, 32, 32) float32 (NCHW). Returns (B, 10) softmax probs."""
    B = img.shape[0]
    x = img.reshape(B, IN_FEATURES).astype(jnp.float32)        # flatten(img, 1)

    # Lane-align the (tiny) weight tensors; zero hidden pad survives leaky_relu
    # as exact zeros, -1e30 logit-lane bias vanishes under softmax.
    w1p = jnp.zeros((IN_FEATURES, HIDDEN_PAD), jnp.bfloat16).at[:, :HIDDEN].set(
        w1.astype(jnp.bfloat16))
    b1p = jnp.zeros((1, HIDDEN_PAD), jnp.float32).at[:, :HIDDEN].set(b1)
    w2p = jnp.zeros((HIDDEN_PAD, OUT_PAD), jnp.bfloat16).at[:HIDDEN, :OUT].set(
        w2.astype(jnp.bfloat16))
    b2p = jnp.full((1, OUT_PAD), MASK_VAL, jnp.float32).at[:, :OUT].set(b2)

    # Batch tile: multiple of 8 sublanes, big (amortize ~0.35us/step), but with
    # >= 2 grid steps when the batch allows so v7x's second TensorCore has work.
    if B < 8:
        TB = B                                     # block dim == full array dim
    else:
        b8 = _round_up(B, 8)
        TB = max(8, min(TB_MAX, _round_up(pl.cdiv(b8, 2), 8)))
    num_tiles = pl.cdiv(B, TB)                     # partial last block is fine

    cost = pl.CostEstimate(
        flops=2 * B * (IN_FEATURES * HIDDEN_PAD + HIDDEN_PAD * OUT_PAD),
        transcendentals=B * OUT_PAD,
        bytes_accessed=(B * IN_FEATURES * 4 + B * OUT * 4
                        + (IN_FEATURES * HIDDEN_PAD + HIDDEN_PAD * OUT_PAD) * 2
                        + (HIDDEN_PAD + OUT_PAD) * 4),
    )

    out = pl.pallas_call(
        mlp_kernel,
        out_shape=jax.ShapeDtypeStruct((B, OUT), jnp.float32),
        grid=(num_tiles,),
        in_specs=[
            pl.BlockSpec((TB, IN_FEATURES), lambda i: (i, 0)),         # x streams
            pl.BlockSpec((IN_FEATURES, HIDDEN_PAD), lambda i: (0, 0)),  # resident
            pl.BlockSpec((1, HIDDEN_PAD), lambda i: (0, 0)),
            pl.BlockSpec((HIDDEN_PAD, OUT_PAD), lambda i: (0, 0)),
            pl.BlockSpec((1, OUT_PAD), lambda i: (0, 0)),
        ],
        out_specs=pl.BlockSpec((TB, OUT), lambda i: (i, 0)),           # (B, 10)
        compiler_params=pltpu.CompilerParams(
            dimension_semantics=("parallel",),       # 2 TCs split the batch tiles
            vmem_limit_bytes=32 * 1024 * 1024,       # > v5e's 16 MiB default
        ),
        cost_estimate=cost,
    )(x, w1p, b1p, w2p, b2p)

    return out


def init_params(key):
    """PyTorch nn.Linear-style uniform(-1/sqrt(fan_in), +1/sqrt(fan_in)) init.

    Weights stored as (in_features, out_features) so the kernel computes
    x @ W + b (transpose of PyTorch's (out, in) storage, identical math).
    """
    k1, k2, k3, k4 = jax.random.split(key, 4)
    bound1 = 1.0 / jnp.sqrt(IN_FEATURES)
    bound2 = 1.0 / jnp.sqrt(HIDDEN)
    w1 = jax.random.uniform(k1, (IN_FEATURES, HIDDEN), jnp.float32, -bound1, bound1)
    b1 = jax.random.uniform(k2, (HIDDEN,), jnp.float32, -bound1, bound1)
    w2 = jax.random.uniform(k3, (HIDDEN, OUT), jnp.float32, -bound2, bound2)
    b2 = jax.random.uniform(k4, (OUT,), jnp.float32, -bound2, bound2)
    return w1, b1, w2, b2


def reference_forward(img, w1, b1, w2, b2):
    """Pure-JAX f32 reference matching the PyTorch module."""
    x = img.reshape(img.shape[0], -1)
    h = x @ w1 + b1
    h = jnp.where(h > 0, h, NEG_SLOPE * h)
    logits = h @ w2 + b2
    return jax.nn.softmax(logits, axis=-1)


if __name__ == "__main__":
    key = jax.random.PRNGKey(0)
    k_img, k_params = jax.random.split(key)

    w1, b1, w2, b2 = init_params(k_params)

    # Small batch, input consistent with Linear(32*32, ...): (B, 1, 32, 32).
    img = jax.random.normal(k_img, (2, 1, 32, 32), jnp.float32)
    out = jax.block_until_ready(custom_mlp_forward(img, w1, b1, w2, b2))
    assert out.shape == (2, 10)
    assert jnp.allclose(jnp.sum(out, axis=-1), 1.0, atol=1e-3)     # exact divide
    ref = reference_forward(img, w1, b1, w2, b2)
    assert jnp.allclose(out, ref, atol=5e-2)                       # bf16 matmuls

    # Exercise the multi-tile + partial-last-block path (B not a multiple of 8).
    img2 = jax.random.normal(k_img, (20, 1, 32, 32), jnp.float32)
    out2 = jax.block_until_ready(custom_mlp_forward(img2, w1, b1, w2, b2))
    assert out2.shape == (20, 10)
    assert jnp.allclose(out2, reference_forward(img2, w1, b1, w2, b2), atol=5e-2)

    print("KERNEL_OK")
</pallas_src>

<mosaic_0001>
module attributes {stable_mosaic.version = 11 : i64} {
  func.func @mlp_kernel(%arg0: i32, %arg1: memref<2x1024xf32, #tpu.memory_space<vmem>>, %arg2: memref<1024x128xbf16, #tpu.memory_space<vmem>>, %arg3: memref<1x128xf32, #tpu.memory_space<vmem>>, %arg4: memref<128x128xbf16, #tpu.memory_space<vmem>>, %arg5: memref<1x128xf32, #tpu.memory_space<vmem>>, %arg6: memref<2x10xf32, #tpu.memory_space<vmem>>) attributes {dimension_semantics = [#tpu.dimension_semantics<parallel>], iteration_bounds = array<i64: 1>, scalar_prefetch = 0 : i64, scratch_operands = 0 : i64, tpu.core_type = #tpu.core_type<tc>, window_params = [{transform_indices = @transform_0, window_bounds = array<i64: 2, 1024>}, {pipeline_mode = #tpu.pipeline_mode<synchronous>, transform_indices = @transform_1, window_bounds = array<i64: 1024, 128>}, {pipeline_mode = #tpu.pipeline_mode<synchronous>, transform_indices = @transform_2, window_bounds = array<i64: 1, 128>}, {pipeline_mode = #tpu.pipeline_mode<synchronous>, transform_indices = @transform_3, window_bounds = array<i64: 128, 128>}, {pipeline_mode = #tpu.pipeline_mode<synchronous>, transform_indices = @transform_4, window_bounds = array<i64: 1, 128>}, {transform_indices = @transform_5, window_bounds = array<i64: 2, 10>}]} {
    %c0 = arith.constant 0 : index
    %c0_0 = arith.constant 0 : index
    %0 = vector.load %arg1[%c0, %c0_0] : memref<2x1024xf32, #tpu.memory_space<vmem>>, vector<2x1024xf32>
    %1 = arith.truncf %0 : vector<2x1024xf32> to vector<2x1024xbf16>
    %c0_1 = arith.constant 0 : index
    %c0_2 = arith.constant 0 : index
    %2 = vector.load %arg2[%c0_1, %c0_2] : memref<1024x128xbf16, #tpu.memory_space<vmem>>, vector<1024x128xbf16>
    %cst = arith.constant dense<0.000000e+00> : vector<2x128xf32>
    %3 = tpu.matmul %1, %2, %cst {dimension_numbers = #tpu.dot_dimension_numbers<[1], [0], [0], [1], [0, 0, 1, 1], [], []>} : vector<2x1024xbf16>, vector<1024x128xbf16>, vector<2x128xf32> -> vector<2x128xf32>
    %c0_3 = arith.constant 0 : index
    %c0_4 = arith.constant 0 : index
    %4 = vector.load %arg3[%c0_3, %c0_4] : memref<1x128xf32, #tpu.memory_space<vmem>>, vector<1x128xf32>
    %5 = vector.broadcast %4 : vector<1x128xf32> to vector<2x128xf32>
    %6 = arith.addf %3, %5 : vector<2x128xf32>
    %cst_5 = arith.constant 0.000000e+00 : f32
    %7 = vector.broadcast %cst_5 : f32 to vector<2x128xf32>
    %8 = arith.cmpf ogt, %6, %7 : vector<2x128xf32>
    %cst_6 = arith.constant 1.000000e-01 : f32
    %9 = vector.broadcast %cst_6 : f32 to vector<2x128xf32>
    %10 = arith.mulf %9, %6 : vector<2x128xf32>
    %11 = arith.select %8, %6, %10 : vector<2x128xi1>, vector<2x128xf32>
    %12 = arith.truncf %11 : vector<2x128xf32> to vector<2x128xbf16>
    %c0_7 = arith.constant 0 : index
    %c0_8 = arith.constant 0 : index
    %13 = vector.load %arg4[%c0_7, %c0_8] : memref<128x128xbf16, #tpu.memory_space<vmem>>, vector<128x128xbf16>
    %cst_9 = arith.constant dense<0.000000e+00> : vector<2x128xf32>
    %14 = tpu.matmul %12, %13, %cst_9 {dimension_numbers = #tpu.dot_dimension_numbers<[1], [0], [0], [1], [0, 0, 1, 1], [], []>} : vector<2x128xbf16>, vector<128x128xbf16>, vector<2x128xf32> -> vector<2x128xf32>
    %c0_10 = arith.constant 0 : index
    %c0_11 = arith.constant 0 : index
    %15 = vector.load %arg5[%c0_10, %c0_11] : memref<1x128xf32, #tpu.memory_space<vmem>>, vector<1x128xf32>
    %16 = vector.broadcast %15 : vector<1x128xf32> to vector<2x128xf32>
    %17 = arith.addf %14, %16 : vector<2x128xf32>
    %cst_12 = arith.constant dense<0xFF800000> : vector<2xf32>
    %18 = vector.multi_reduction <maximumf>, %17, %cst_12 [1] : vector<2x128xf32> to vector<2xf32>
    %19 = vector.shape_cast %18 : vector<2xf32> to vector<2x1xf32>
    %20 = vector.broadcast %19 : vector<2x1xf32> to vector<2x128xf32>
    %21 = arith.subf %17, %20 : vector<2x128xf32>
    %22 = math.exp %21 : vector<2x128xf32>
    %cst_13 = arith.constant dense<0.000000e+00> : vector<2xf32>
    %23 = vector.multi_reduction <add>, %22, %cst_13 [1] : vector<2x128xf32> to vector<2xf32>
    %24 = vector.shape_cast %23 : vector<2xf32> to vector<2x1xf32>
    %25 = vector.extract_strided_slice %22 {offsets = [0, 0], sizes = [2, 10], strides = [1, 1]} : vector<2x128xf32> to vector<2x10xf32>
    %26 = vector.broadcast %24 : vector<2x1xf32> to vector<2x10xf32>
    %27 = arith.divf %25, %26 : vector<2x10xf32>
    %c0_14 = arith.constant 0 : index
    %c0_15 = arith.constant 0 : index
    %28 = vector.load %arg6[%c0_14, %c0_15] : memref<2x10xf32, #tpu.memory_space<vmem>>, vector<2x10xf32>
    tpu.vector_store %arg6[%c0_14, %c0_15], %27 {strides = array<i32>} : memref<2x10xf32, #tpu.memory_space<vmem>>, vector<2x10xf32>,
    return
  }
  func.func @transform_0(%arg0: i32) -> (i32, i32) {
    %c0_i32 = arith.constant 0 : i32
    %c0_i32_0 = arith.constant 0 : i32
    return %arg0, %c0_i32 : i32, i32
  }
  func.func @transform_1(%arg0: i32) -> (i32, i32) {
    %c0_i32 = arith.constant 0 : i32
    %c0_i32_0 = arith.constant 0 : i32
    %c0_i32_1 = arith.constant 0 : i32
    return %c0_i32, %c0_i32_0 : i32, i32
  }
  func.func @transform_2(%arg0: i32) -> (i32, i32) {
    %c0_i32 = arith.constant 0 : i32
    %c0_i32_0 = arith.constant 0 : i32
    %c0_i32_1 = arith.constant 0 : i32
    return %c0_i32, %c0_i32_0 : i32, i32
  }
  func.func @transform_3(%arg0: i32) -> (i32, i32) {
    %c0_i32 = arith.constant 0 : i32
    %c0_i32_0 = arith.constant 0 : i32
    %c0_i32_1 = arith.constant 0 : i32
    return %c0_i32, %c0_i32_0 : i32, i32
  }
  func.func @transform_4(%arg0: i32) -> (i32, i32) {
    %c0_i32 = arith.constant 0 : i32
    %c0_i32_0 = arith.constant 0 : i32
    %c0_i32_1 = arith.constant 0 : i32
    return %c0_i32, %c0_i32_0 : i32, i32
  }
  func.func @transform_5(%arg0: i32) -> (i32, i32) {
    %c0_i32 = arith.constant 0 : i32
    %c0_i32_0 = arith.constant 0 : i32
    return %arg0, %c0_i32 : i32, i32
  }
}

</mosaic_0001>

<llo_original>
// kernel: custom_mlp_forward.1
$region0: #{custom_mlp_forward.1}
  #allocation0 [shape = 'u32[]', space=smem, size = 0x4, offset = 0x4, fixed_abs, tag = 'smem constant byte address 0x4 - core index']
  #allocation1 [shape = 'u32[144,128]{1,0:T(1,128)}', space=vmem, size = 0x12000, scoped, tag = 'internal scratch']
  %s0 = inlined_call_operand.vmem [shape: f32[2,1024], index: 0, kind: input, shape index: {}]
  %s1 = inlined_call_operand.vmem [shape: bf16[1024,128], index: 1, kind: input, shape index: {}]
  %s2 = inlined_call_operand.vmem [shape: f32[1,128], index: 2, kind: input, shape index: {}]
  %s3 = inlined_call_operand.vmem [shape: bf16[128,128], index: 3, kind: input, shape index: {}]
  %s4 = inlined_call_operand.vmem [shape: f32[1,128], index: 4, kind: input, shape index: {}]
  %s5 = inlined_call_operand.hbm [shape: f32[2,10], index: 5, kind: output, shape index: {}]
  %s6 = sld [smem:[#allocation0]]
  $region30: #{custom_mlp_forward.1} parent=0
    _
  %s8 = ssub.s32 1, %s6
  %s9 = scalar_select 0, %s8, %s6
  $region1: #{custom_mlp_forward.1} parent=0
    #allocation2 [shape = 'u8[1024]{0}', space=vmem, size = 0x400, scoped, tag = 'output window, operand 0, single buffered']
    #allocation3 [shape = 's32[1]{0}', space=sflag, size = 0x4, scoped, tag = 'scoped memory for custom_mlp_forward.1']
    %10 = vsyncpa [#allocation3], 0
    // Predicated region
    $region2: #{custom_mlp_forward.1} parent=1 // pred_check
      _
    $region3: #{custom_mlp_forward.1} parent=1 // pred_check_branch
      %12 = sbr.rel (0) target = $region5
    $region4: #{custom_mlp_forward.1} parent=1 // pred_region
      _
    $region5: #{custom_mlp_forward.1} parent=1 // pred_fallthru
      _
    // Predicated region
    $region6: #{custom_mlp_forward.1} parent=1 // pred_check
      _
    $region7: #{custom_mlp_forward.1} parent=1 // pred_check_branch
      %14 = sbr.rel (0) target = $region9
    $region8: #{custom_mlp_forward.1} parent=1 // pred_region
      _
    $region9: #{custom_mlp_forward.1} parent=1 // pred_fallthru
      _
    // Predicated region
    $region10: #{custom_mlp_forward.1} parent=1 // pred_check
      _
    $region11: #{custom_mlp_forward.1} parent=1 // pred_check_branch
      %16 = sbr.rel (0) target = $region13
    $region12: #{custom_mlp_forward.1} parent=1 // pred_region
      _
    $region13: #{custom_mlp_forward.1} parent=1 // pred_fallthru
      _
    // Predicated region
    $region14: #{custom_mlp_forward.1} parent=1 // pred_check
      _
    $region15: #{custom_mlp_forward.1} parent=1 // pred_check_branch
      %18 = sbr.rel (0) target = $region17
    $region16: #{custom_mlp_forward.1} parent=1 // pred_region
      _
    $region17: #{custom_mlp_forward.1} parent=1 // pred_fallthru
      _
    // Predicated region
    $region18: #{custom_mlp_forward.1} parent=1 // pred_check
      _
    $region19: #{custom_mlp_forward.1} parent=1 // pred_check_branch
      %20 = sbr.rel (0) target = $region21
    $region20: #{custom_mlp_forward.1} parent=1 // pred_region
      _
    $region21: #{custom_mlp_forward.1} parent=1 // pred_fallthru
      _
    %v22 = vld [vmem:[%s0] sm:$0xff]
    %v23 = vld [vmem:[%s0 + $0x8] sm:$0xff]
    %v26 = vcombine.high %v22, %v22
    %v28 = vunpack.c.l.s4 1983009808
    %v29 = vunpack.c.0.s8 %v28
    %v30 = vlaneseq
    %v31 = vshrl.u32 %v30, 7
    %v32 = vsub.s32 %v29, %v31
    %v33 = vrot.slane %v22, %v32
    %v35 = vunpack.c.l.s4 1983009808
    %v36 = vunpack.c.0.s8 %v35
    %v37 = vlaneseq
    %v38 = vshrl.u32 %v37, 7
    %v39 = vsub.s32 %v36, %v38
    %v40 = vrot.slane %v26, %v39
    %v41 = vcombine.high %v33, %v33
    %v42 = vcombine.high %v40, %v40
    %v43 = vcombine.high %v23, %v23
    %v45 = vunpack.c.l.s4 1983009808
    %v46 = vunpack.c.0.s8 %v45
    %v47 = vlaneseq
    %v48 = vshrl.u32 %v47, 7
    %v49 = vsub.s32 %v46, %v48
    %v50 = vrot.slane %v23, %v49
    %v52 = vunpack.c.l.s4 1983009808
    %v53 = vunpack.c.0.s8 %v52
    %v54 = vlaneseq
    %v55 = vshrl.u32 %v54, 7
    %v56 = vsub.s32 %v53, %v55
    %v57 = vrot.slane %v43, %v56
    %v58 = vcombine.high %v50, %v50
    %v59 = vcombine.high %v57, %v57
    %v68 = vpack.c.bf16 %v33, %v33
    %v69 = vpack.c.bf16 %v41, %v41
    %v70 = vpack.c.bf16 %v40, %v40
    %v71 = vpack.c.bf16 %v42, %v42
    %v72 = vpack.c.bf16 %v50, %v50
    %v73 = vpack.c.bf16 %v58, %v58
    %v74 = vpack.c.bf16 %v57, %v57
    %v75 = vpack.c.bf16 %v59, %v59
    %v76 = vld [vmem:[%s1] sm:$0xf]
    %v77 = vld [vmem:[%s1 + $0x4] sm:$0xf]
    %v78 = vld [vmem:[%s1 + $0x8] sm:$0xf]
    %v79 = vld [vmem:[%s1 + $0xc] sm:$0xf]
    %v80 = vld [vmem:[%s1 + $0x10] sm:$0xf]
    %v81 = vld [vmem:[%s1 + $0x14] sm:$0xf]
    %v82 = vld [vmem:[%s1 + $0x18] sm:$0xf]
    %v83 = vld [vmem:[%s1 + $0x1c] sm:$0xf]
    %v84 = vld [vmem:[%s1 + $0x20] sm:$0xf]
    %v85 = vld [vmem:[%s1 + $0x24] sm:$0xf]
    %v86 = vld [vmem:[%s1 + $0x28] sm:$0xf]
    %v87 = vld [vmem:[%s1 + $0x2c] sm:$0xf]
    %v88 = vld [vmem:[%s1 + $0x30] sm:$0xf]
    %v89 = vld [vmem:[%s1 + $0x34] sm:$0xf]
    %v90 = vld [vmem:[%s1 + $0x38] sm:$0xf]
    %v91 = vld [vmem:[%s1 + $0x3c] sm:$0xf]
    %v92 = vld [vmem:[%s1 + $0x40] sm:$0xf]
    %v93 = vld [vmem:[%s1 + $0x44] sm:$0xf]
    %v94 = vld [vmem:[%s1 + $0x48] sm:$0xf]
    %v95 = vld [vmem:[%s1 + $0x4c] sm:$0xf]
    %v96 = vld [vmem:[%s1 + $0x50] sm:$0xf]
    %v97 = vld [vmem:[%s1 + $0x54] sm:$0xf]
    %v98 = vld [vmem:[%s1 + $0x58] sm:$0xf]
    %v99 = vld [vmem:[%s1 + $0x5c] sm:$0xf]
    %v100 = vld [vmem:[%s1 + $0x60] sm:$0xf]
    %v101 = vld [vmem:[%s1 + $0x64] sm:$0xf]
    %v102 = vld [vmem:[%s1 + $0x68] sm:$0xf]
    %v103 = vld [vmem:[%s1 + $0x6c] sm:$0xf]
    %v104 = vld [vmem:[%s1 + $0x70] sm:$0xf]
    %v105 = vld [vmem:[%s1 + $0x74] sm:$0xf]
    %v106 = vld [vmem:[%s1 + $0x78] sm:$0xf]
    %v107 = vld [vmem:[%s1 + $0x7c] sm:$0xf]
    %v108 = vld [vmem:[%s1 + $0x80] sm:$0xf]
    %v109 = vld [vmem:[%s1 + $0x84] sm:$0xf]
    %v110 = vld [vmem:[%s1 + $0x88] sm:$0xf]
    %v111 = vld [vmem:[%s1 + $0x8c] sm:$0xf]
    %v112 = vld [vmem:[%s1 + $0x90] sm:$0xf]
    %v113 = vld [vmem:[%s1 + $0x94] sm:$0xf]
    %v114 = vld [vmem:[%s1 + $0x98] sm:$0xf]
    %v115 = vld [vmem:[%s1 + $0x9c] sm:$0xf]
    %v116 = vld [vmem:[%s1 + $0xa0] sm:$0xf]
    %v117 = vld [vmem:[%s1 + $0xa4] sm:$0xf]
    %v118 = vld [vmem:[%s1 + $0xa8] sm:$0xf]
    %v119 = vld [vmem:[%s1 + $0xac] sm:$0xf]
    %v120 = vld [vmem:[%s1 + $0xb0] sm:$0xf]
    %v121 = vld [vmem:[%s1 + $0xb4] sm:$0xf]
    %v122 = vld [vmem:[%s1 + $0xb8] sm:$0xf]
    %v123 = vld [vmem:[%s1 + $0xbc] sm:$0xf]
    %v124 = vld [vmem:[%s1 + $0xc0] sm:$0xf]
    %v125 = vld [vmem:[%s1 + $0xc4] sm:$0xf]
    %v126 = vld [vmem:[%s1 + $0xc8] sm:$0xf]
    %v127 = vld [vmem:[%s1 + $0xcc] sm:$0xf]
    %v128 = vld [vmem:[%s1 + $0xd0] sm:$0xf]
    %v129 = vld [vmem:[%s1 + $0xd4] sm:$0xf]
    %v130 = vld [vmem:[%s1 + $0xd8] sm:$0xf]
    %v131 = vld [vmem:[%s1 + $0xdc] sm:$0xf]
    %v132 = vld [vmem:[%s1 + $0xe0] sm:$0xf]
    %v133 = vld [vmem:[%s1 + $0xe4] sm:$0xf]
    %v134 = vld [vmem:[%s1 + $0xe8] sm:$0xf]
    %v135 = vld [vmem:[%s1 + $0xec] sm:$0xf]
    %v136 = vld [vmem:[%s1 + $0xf0] sm:$0xf]
    %v137 = vld [vmem:[%s1 + $0xf4] sm:$0xf]
    %v138 = vld [vmem:[%s1 + $0xf8] sm:$0xf]
    %v139 = vld [vmem:[%s1 + $0xfc] sm:$0xf]
    %v140 = vld [vmem:[%s1 + $0x100] sm:$0xf]
    %v141 = vld [vmem:[%s1 + $0x104] sm:$0xf]
    %v142 = vld [vmem:[%s1 + $0x108] sm:$0xf]
    %v143 = vld [vmem:[%s1 + $0x10c] sm:$0xf]
    %v144 = vld [vmem:[%s1 + $0x110] sm:$0xf]
    %v145 = vld [vmem:[%s1 + $0x114] sm:$0xf]
    %v146 = vld [vmem:[%s1 + $0x118] sm:$0xf]
    %v147 = vld [vmem:[%s1 + $0x11c] sm:$0xf]
    %v148 = vld [vmem:[%s1 + $0x120] sm:$0xf]
    %v149 = vld [vmem:[%s1 + $0x124] sm:$0xf]
    %v150 = vld [vmem:[%s1 + $0x128] sm:$0xf]
    %v151 = vld [vmem:[%s1 + $0x12c] sm:$0xf]
    %v152 = vld [vmem:[%s1 + $0x130] sm:$0xf]
    %v153 = vld [vmem:[%s1 + $0x134] sm:$0xf]
    %v154 = vld [vmem:[%s1 + $0x138] sm:$0xf]
    %v155 = vld [vmem:[%s1 + $0x13c] sm:$0xf]
    %v156 = vld [vmem:[%s1 + $0x140] sm:$0xf]
    %v157 = vld [vmem:[%s1 + $0x144] sm:$0xf]
    %v158 = vld [vmem:[%s1 + $0x148] sm:$0xf]
    %v159 = vld [vmem:[%s1 + $0x14c] sm:$0xf]
    %v160 = vld [vmem:[%s1 + $0x150] sm:$0xf]
    %v161 = vld [vmem:[%s1 + $0x154] sm:$0xf]
    %v162 = vld [vmem:[%s1 + $0x158] sm:$0xf]
    %v163 = vld [vmem:[%s1 + $0x15c] sm:$0xf]
    %v164 = vld [vmem:[%s1 + $0x160] sm:$0xf]
    %v165 = vld [vmem:[%s1 + $0x164] sm:$0xf]
    %v166 = vld [vmem:[%s1 + $0x168] sm:$0xf]
    %v167 = vld [vmem:[%s1 + $0x16c] sm:$0xf]
    %v168 = vld [vmem:[%s1 + $0x170] sm:$0xf]
    %v169 = vld [vmem:[%s1 + $0x174] sm:$0xf]
    %v170 = vld [vmem:[%s1 + $0x178] sm:$0xf]
    %v171 = vld [vmem:[%s1 + $0x17c] sm:$0xf]
    %v172 = vld [vmem:[%s1 + $0x180] sm:$0xf]
    %v173 = vld [vmem:[%s1 + $0x184] sm:$0xf]
    %v174 = vld [vmem:[%s1 + $0x188] sm:$0xf]
    %v175 = vld [vmem:[%s1 + $0x18c] sm:$0xf]
    %v176 = vld [vmem:[%s1 + $0x190] sm:$0xf]
    %v177 = vld [vmem:[%s1 + $0x194] sm:$0xf]
    %v178 = vld [vmem:[%s1 + $0x198] sm:$0xf]
    %v179 = vld [vmem:[%s1 + $0x19c] sm:$0xf]
    %v180 = vld [vmem:[%s1 + $0x1a0] sm:$0xf]
    %v181 = vld [vmem:[%s1 + $0x1a4] sm:$0xf]
    %v182 = vld [vmem:[%s1 + $0x1a8] sm:$0xf]
    %v183 = vld [vmem:[%s1 + $0x1ac] sm:$0xf]
    %v184 = vld [vmem:[%s1 + $0x1b0] sm:$0xf]
    %v185 = vld [vmem:[%s1 + $0x1b4] sm:$0xf]
    %v186 = vld [vmem:[%s1 + $0x1b8] sm:$0xf]
    %v187 = vld [vmem:[%s1 + $0x1bc] sm:$0xf]
    %v188 = vld [vmem:[%s1 + $0x1c0] sm:$0xf]
    %v189 = vld [vmem:[%s1 + $0x1c4] sm:$0xf]
    %v190 = vld [vmem:[%s1 + $0x1c8] sm:$0xf]
    %v191 = vld [vmem:[%s1 + $0x1cc] sm:$0xf]
    %v192 = vld [vmem:[%s1 + $0x1d0] sm:$0xf]
    %v193 = vld [vmem:[%s1 + $0x1d4] sm:$0xf]
    %v194 = vld [vmem:[%s1 + $0x1d8] sm:$0xf]
    %v195 = vld [vmem:[%s1 + $0x1dc] sm:$0xf]
    %v196 = vld [vmem:[%s1 + $0x1e0] sm:$0xf]
    %v197 = vld [vmem:[%s1 + $0x1e4] sm:$0xf]
    %v198 = vld [vmem:[%s1 + $0x1e8] sm:$0xf]
    %v199 = vld [vmem:[%s1 + $0x1ec] sm:$0xf]
    %v200 = vld [vmem:[%s1 + $0x1f0] sm:$0xf]
    %v201 = vld [vmem:[%s1 + $0x1f4] sm:$0xf]
    %v202 = vld [vmem:[%s1 + $0x1f8] sm:$0xf]
    %v203 = vld [vmem:[%s1 + $0x1fc] sm:$0xf]
    %v204 = vld [vmem:[%s2] sm:$0x1]
    %v206 = vlaneseq
    %v207 = vshrl.u32 %v206, 7
    %v208 = vsub.s32 0, %v207
    %v209 = vrot.slane %v204, %v208
    %v339 = vunpack.c.l.b16 %v76
    %v340 = vunpack.c.l.b16 %v77
    %v341 = vunpack.c.l.b16 %v78
    %v342 = vunpack.c.l.b16 %v79
    %v343 = vunpack.c.l.b16 %v80
    %v344 = vunpack.c.l.b16 %v81
    %v345 = vunpack.c.l.b16 %v82
    %v346 = vunpack.c.l.b16 %v83
    %v347 = vunpack.c.l.b16 %v84
    %v348 = vunpack.c.l.b16 %v85
    %v349 = vunpack.c.l.b16 %v86
    %v350 = vunpack.c.l.b16 %v87
    %v351 = vunpack.c.l.b16 %v88
    %v352 = vunpack.c.l.b16 %v89
    %v353 = vunpack.c.l.b16 %v90
    %v354 = vunpack.c.l.b16 %v91
    %v355 = vunpack.c.l.b16 %v92
    %v356 = vunpack.c.l.b16 %v93
    %v357 = vunpack.c.l.b16 %v94
    %v358 = vunpack.c.l.b16 %v95
    %v359 = vunpack.c.l.b16 %v96
    %v360 = vunpack.c.l.b16 %v97
    %v361 = vunpack.c.l.b16 %v98
    %v362 = vunpack.c.l.b16 %v99
    %v363 = vunpack.c.l.b16 %v100
    %v364 = vunpack.c.l.b16 %v101
    %v365 = vunpack.c.l.b16 %v102
    %v366 = vunpack.c.l.b16 %v103
    %v367 = vunpack.c.l.b16 %v104
    %v368 = vunpack.c.l.b16 %v105
    %v369 = vunpack.c.l.b16 %v106
    %v370 = vunpack.c.l.b16 %v107
    %v371 = vunpack.c.l.b16 %v108
    %v372 = vunpack.c.l.b16 %v109
    %v373 = vunpack.c.l.b16 %v110
    %v374 = vunpack.c.l.b16 %v111
    %v375 = vunpack.c.l.b16 %v112
    %v376 = vunpack.c.l.b16 %v113
    %v377 = vunpack.c.l.b16 %v114
    %v378 = vunpack.c.l.b16 %v115
    %v379 = vunpack.c.l.b16 %v116
    %v380 = vunpack.c.l.b16 %v117
    %v381 = vunpack.c.l.b16 %v118
    %v382 = vunpack.c.l.b16 %v119
    %v383 = vunpack.c.l.b16 %v120
    %v384 = vunpack.c.l.b16 %v121
    %v385 = vunpack.c.l.b16 %v122
    %v386 = vunpack.c.l.b16 %v123
    %v387 = vunpack.c.l.b16 %v124
    %v388 = vunpack.c.l.b16 %v125
    %v389 = vunpack.c.l.b16 %v126
    %v390 = vunpack.c.l.b16 %v127
    %v391 = vunpack.c.l.b16 %v128
    %v392 = vunpack.c.l.b16 %v129
    %v393 = vunpack.c.l.b16 %v130
    %v394 = vunpack.c.l.b16 %v131
    %v395 = vunpack.c.l.b16 %v132
    %v396 = vunpack.c.l.b16 %v133
    %v397 = vunpack.c.l.b16 %v134
    %v398 = vunpack.c.l.b16 %v135
    %v399 = vunpack.c.l.b16 %v136
    %v400 = vunpack.c.l.b16 %v137
    %v401 = vunpack.c.l.b16 %v138
    %v402 = vunpack.c.l.b16 %v139
    %v403 = vunpack.c.l.b16 %v140
    %v404 = vunpack.c.l.b16 %v141
    %v405 = vunpack.c.l.b16 %v142
    %v406 = vunpack.c.l.b16 %v143
    %v407 = vunpack.c.l.b16 %v144
    %v408 = vunpack.c.l.b16 %v145
    %v409 = vunpack.c.l.b16 %v146
    %v410 = vunpack.c.l.b16 %v147
    %v411 = vunpack.c.l.b16 %v148
    %v412 = vunpack.c.l.b16 %v149
    %v413 = vunpack.c.l.b16 %v150
    %v414 = vunpack.c.l.b16 %v151
    %v415 = vunpack.c.l.b16 %v152
    %v416 = vunpack.c.l.b16 %v153
    %v417 = vunpack.c.l.b16 %v154
    %v418 = vunpack.c.l.b16 %v155
    %v419 = vunpack.c.l.b16 %v156
    %v420 = vunpack.c.l.b16 %v157
    %v421 = vunpack.c.l.b16 %v158
    %v422 = vunpack.c.l.b16 %v159
    %v423 = vunpack.c.l.b16 %v160
    %v424 = vunpack.c.l.b16 %v161
    %v425 = vunpack.c.l.b16 %v162
    %v426 = vunpack.c.l.b16 %v163
    %v427 = vunpack.c.l.b16 %v164
    %v428 = vunpack.c.l.b16 %v165
    %v429 = vunpack.c.l.b16 %v166
    %v430 = vunpack.c.l.b16 %v167
    %v431 = vunpack.c.l.b16 %v168
    %v432 = vunpack.c.l.b16 %v169
    %v433 = vunpack.c.l.b16 %v170
    %v434 = vunpack.c.l.b16 %v171
    %v435 = vunpack.c.l.b16 %v172
    %v436 = vunpack.c.l.b16 %v173
    %v437 = vunpack.c.l.b16 %v174
    %v438 = vunpack.c.l.b16 %v175
    %v439 = vunpack.c.l.b16 %v176
    %v440 = vunpack.c.l.b16 %v177
    %v441 = vunpack.c.l.b16 %v178
    %v442 = vunpack.c.l.b16 %v179
    %v443 = vunpack.c.l.b16 %v180
    %v444 = vunpack.c.l.b16 %v181
    %v445 = vunpack.c.l.b16 %v182
    %v446 = vunpack.c.l.b16 %v183
    %v447 = vunpack.c.l.b16 %v184
    %v448 = vunpack.c.l.b16 %v185
    %v449 = vunpack.c.l.b16 %v186
    %v450 = vunpack.c.l.b16 %v187
    %v451 = vunpack.c.l.b16 %v188
    %v452 = vunpack.c.l.b16 %v189
    %v453 = vunpack.c.l.b16 %v190
    %v454 = vunpack.c.l.b16 %v191
    %v455 = vunpack.c.l.b16 %v192
    %v456 = vunpack.c.l.b16 %v193
    %v457 = vunpack.c.l.b16 %v194
    %v458 = vunpack.c.l.b16 %v195
    %v459 = vunpack.c.l.b16 %v196
    %v460 = vunpack.c.l.b16 %v197
    %v461 = vunpack.c.l.b16 %v198
    %v462 = vunpack.c.l.b16 %v199
    %v463 = vunpack.c.l.b16 %v200
    %v464 = vunpack.c.l.b16 %v201
    %v465 = vunpack.c.l.b16 %v202
    %v466 = vunpack.c.l.b16 %v203
    %v467 = vpack.c.b16 %v340, %v339
    %v468 = vpack.c.b16 %v342, %v341
    %v469 = vpack.c.b16 %v344, %v343
    %v470 = vpack.c.b16 %v346, %v345
    %v471 = vpack.c.b16 %v348, %v347
    %v472 = vpack.c.b16 %v350, %v349
    %v473 = vpack.c.b16 %v352, %v351
    %v474 = vpack.c.b16 %v354, %v353
    %v475 = vpack.c.b16 %v356, %v355
    %v476 = vpack.c.b16 %v358, %v357
    %v477 = vpack.c.b16 %v360, %v359
    %v478 = vpack.c.b16 %v362, %v361
    %v479 = vpack.c.b16 %v364, %v363
    %v480 = vpack.c.b16 %v366, %v365
    %v481 = vpack.c.b16 %v368, %v367
    %v482 = vpack.c.b16 %v370, %v369
    %v483 = vpack.c.b16 %v372, %v371
    %v484 = vpack.c.b16 %v374, %v373
    %v485 = vpack.c.b16 %v376, %v375
    %v486 = vpack.c.b16 %v378, %v377
    %v487 = vpack.c.b16 %v380, %v379
    %v488 = vpack.c.b16 %v382, %v381
    %v489 = vpack.c.b16 %v384, %v383
    %v490 = vpack.c.b16 %v386, %v385
    %v491 = vpack.c.b16 %v388, %v387
    %v492 = vpack.c.b16 %v390, %v389
    %v493 = vpack.c.b16 %v392, %v391
    %v494 = vpack.c.b16 %v394, %v393
    %v495 = vpack.c.b16 %v396, %v395
    %v496 = vpack.c.b16 %v398, %v397
    %v497 = vpack.c.b16 %v400, %v399
    %v498 = vpack.c.b16 %v402, %v401
    %v499 = vpack.c.b16 %v404, %v403
    %v500 = vpack.c.b16 %v406, %v405
    %v501 = vpack.c.b16 %v408, %v407
    %v502 = vpack.c.b16 %v410, %v409
    %v503 = vpack.c.b16 %v412, %v411
    %v504 = vpack.c.b16 %v414, %v413
    %v505 = vpack.c.b16 %v416, %v415
    %v506 = vpack.c.b16 %v418, %v417
    %v507 = vpack.c.b16 %v420, %v419
    %v508 = vpack.c.b16 %v422, %v421
    %v509 = vpack.c.b16 %v424, %v423
    %v510 = vpack.c.b16 %v426, %v425
    %v511 = vpack.c.b16 %v428, %v427
    %v512 = vpack.c.b16 %v430, %v429
    %v513 = vpack.c.b16 %v432, %v431
    %v514 = vpack.c.b16 %v434, %v433
    %v515 = vpack.c.b16 %v436, %v435
    %v516 = vpack.c.b16 %v438, %v437
    %v517 = vpack.c.b16 %v440, %v439
    %v518 = vpack.c.b16 %v442, %v441
    %v519 = vpack.c.b16 %v444, %v443
    %v520 = vpack.c.b16 %v446, %v445
    %v521 = vpack.c.b16 %v448, %v447
    %v522 = vpack.c.b16 %v450, %v449
    %v523 = vpack.c.b16 %v452, %v451
    %v524 = vpack.c.b16 %v454, %v453
    %v525 = vpack.c.b16 %v456, %v455
    %v526 = vpack.c.b16 %v458, %v457
    %v527 = vpack.c.b16 %v460, %v459
    %v528 = vpack.c.b16 %v462, %v461
    %v529 = vpack.c.b16 %v464, %v463
    %v530 = vpack.c.b16 %v466, %v465
    %595 = vmatprep.subr.bf16.mxu0 0
    %596 = vmatpush1.bf16.msra.mxu0 %v467
    %597 = vmatprep.subr.bf16.mxu0 0
    %598 = vmatpush1.bf16.msra.mxu0 %v468
    %599 = vmatprep.subr.bf16.mxu0 0
    %600 = vmatpush1.bf16.msra.mxu0 %v469
    %601 = vmatprep.subr.bf16.mxu0 0
    %602 = vmatpush1.bf16.msra.mxu0 %v470
    %603 = vmatprep.subr.bf16.mxu0 0
    %604 = vmatpush1.bf16.msra.mxu0 %v471
    %605 = vmatprep.subr.bf16.mxu0 0
    %606 = vmatpush1.bf16.msra.mxu0 %v472
    %607 = vmatprep.subr.bf16.mxu0 0
    %608 = vmatpush1.bf16.msra.mxu0 %v473
    %609 = vmatprep.subr.bf16.mxu0 0
    %610 = vmatpush1.bf16.msra.mxu0 %v474
    %611 = vmatprep.subr.bf16.mxu0 0
    %612 = vmatpush1.bf16.msra.mxu0 %v475
    %613 = vmatprep.subr.bf16.mxu0 0
    %614 = vmatpush1.bf16.msra.mxu0 %v476
    %615 = vmatprep.subr.bf16.mxu0 0
    %616 = vmatpush1.bf16.msra.mxu0 %v477
    %617 = vmatprep.subr.bf16.mxu0 0
    %618 = vmatpush1.bf16.msra.mxu0 %v478
    %619 = vmatprep.subr.bf16.mxu0 0
    %620 = vmatpush1.bf16.msra.mxu0 %v479
    %621 = vmatprep.subr.bf16.mxu0 0
    %622 = vmatpush1.bf16.msra.mxu0 %v480
    %623 = vmatprep.subr.bf16.mxu0 0
    %624 = vmatpush1.bf16.msra.mxu0 %v481
    %625 = vmatprep.subr.bf16.mxu0 0
    %626 = vmatpush1.bf16.msra.mxu0 %v482
    %627 = vmatprep.mubr.bf16.mxu0 %v69
    %628 = vmatmul.mubr.bf16.gmra.mrb[0].mxu0 %v68
    %v629 = vpop.f32.mrb[0].mxu0
    %v630 = vadd.f32 %v209, %v629
    %v631 = vpop.f32.mrb[0].mxu0
    %v632 = vpop.f32.mrb[0].mxu0
    %v633 = vpop.f32.mrb[0].mxu0
    %634 = vdwg.mxu0
    %635 = vmatprep.subr.bf16.mxu0 0
    %636 = vmatpush1.bf16.msra.mxu0 %v483
    %637 = vmatprep.subr.bf16.mxu0 0
    %638 = vmatpush1.bf16.msra.mxu0 %v484
    %639 = vmatprep.subr.bf16.mxu0 0
    %640 = vmatpush1.bf16.msra.mxu0 %v485
    %641 = vmatprep.subr.bf16.mxu0 0
    %642 = vmatpush1.bf16.msra.mxu0 %v486
    %643 = vmatprep.subr.bf16.mxu0 0
    %644 = vmatpush1.bf16.msra.mxu0 %v487
    %645 = vmatprep.subr.bf16.mxu0 0
    %646 = vmatpush1.bf16.msra.mxu0 %v488
    %647 = vmatprep.subr.bf16.mxu0 0
    %648 = vmatpush1.bf16.msra.mxu0 %v489
    %649 = vmatprep.subr.bf16.mxu0 0
    %650 = vmatpush1.bf16.msra.mxu0 %v490
    %651 = vmatprep.subr.bf16.mxu0 0
    %652 = vmatpush1.bf16.msra.mxu0 %v491
    %653 = vmatprep.subr.bf16.mxu0 0
    %654 = vmatpush1.bf16.msra.mxu0 %v492
    %655 = vmatprep.subr.bf16.mxu0 0
    %656 = vmatpush1.bf16.msra.mxu0 %v493
    %657 = vmatprep.subr.bf16.mxu0 0
    %658 = vmatpush1.bf16.msra.mxu0 %v494
    %659 = vmatprep.subr.bf16.mxu0 0
    %660 = vmatpush1.bf16.msra.mxu0 %v495
    %661 = vmatprep.subr.bf16.mxu0 0
    %662 = vmatpush1.bf16.msra.mxu0 %v496
    %663 = vmatprep.subr.bf16.mxu0 0
    %664 = vmatpush1.bf16.msra.mxu0 %v497
    %665 = vmatprep.subr.bf16.mxu0 0
    %666 = vmatpush1.bf16.msra.mxu0 %v498
    %667 = vmatprep.mubr.bf16.mxu0 %v71
    %668 = vmatmul.mubr.bf16.gmra.mrb[0].mxu0 %v70
    %v669 = vpop.f32.mrb[0].mxu0
    %v670 = vadd.f32 %v630, %v669
    %v671 = vpop.f32.mrb[0].mxu0
    %v672 = vpop.f32.mrb[0].mxu0
    %v673 = vpop.f32.mrb[0].mxu0
    %674 = vdwg.mxu0
    %675 = vmatprep.subr.bf16.mxu0 0
    %676 = vmatpush1.bf16.msra.mxu0 %v499
    %677 = vmatprep.subr.bf16.mxu0 0
    %678 = vmatpush1.bf16.msra.mxu0 %v500
    %679 = vmatprep.subr.bf16.mxu0 0
    %680 = vmatpush1.bf16.msra.mxu0 %v501
    %681 = vmatprep.subr.bf16.mxu0 0
    %682 = vmatpush1.bf16.msra.mxu0 %v502
    %683 = vmatprep.subr.bf16.mxu0 0
    %684 = vmatpush1.bf16.msra.mxu0 %v503
    %685 = vmatprep.subr.bf16.mxu0 0
    %686 = vmatpush1.bf16.msra.mxu0 %v504
    %687 = vmatprep.subr.bf16.mxu0 0
    %688 = vmatpush1.bf16.msra.mxu0 %v505
    %689 = vmatprep.subr.bf16.mxu0 0
    %690 = vmatpush1.bf16.msra.mxu0 %v506
    %691 = vmatprep.subr.bf16.mxu0 0
    %692 = vmatpush1.bf16.msra.mxu0 %v507
    %693 = vmatprep.subr.bf16.mxu0 0
    %694 = vmatpush1.bf16.msra.mxu0 %v508
    %695 = vmatprep.subr.bf16.mxu0 0
    %696 = vmatpush1.bf16.msra.mxu0 %v509
    %697 = vmatprep.subr.bf16.mxu0 0
    %698 = vmatpush1.bf16.msra.mxu0 %v510
    %699 = vmatprep.subr.bf16.mxu0 0
    %700 = vmatpush1.bf16.msra.mxu0 %v511
    %701 = vmatprep.subr.bf16.mxu0 0
    %702 = vmatpush1.bf16.msra.mxu0 %v512
    %703 = vmatprep.subr.bf16.mxu0 0
    %704 = vmatpush1.bf16.msra.mxu0 %v513
    %705 = vmatprep.subr.bf16.mxu0 0
    %706 = vmatpush1.bf16.msra.mxu0 %v514
    %707 = vmatprep.mubr.bf16.mxu0 %v73
    %708 = vmatmul.mubr.bf16.gmra.mrb[0].mxu0 %v72
    %v709 = vpop.f32.mrb[0].mxu0
    %v710 = vadd.f32 %v670, %v709
    %v711 = vpop.f32.mrb[0].mxu0
    %v712 = vpop.f32.mrb[0].mxu0
    %v713 = vpop.f32.mrb[0].mxu0
    %714 = vdwg.mxu0
    %715 = vmatprep.subr.bf16.mxu0 0
    %716 = vmatpush1.bf16.msra.mxu0 %v515
    %717 = vmatprep.subr.bf16.mxu0 0
    %718 = vmatpush1.bf16.msra.mxu0 %v516
    %719 = vmatprep.subr.bf16.mxu0 0
    %720 = vmatpush1.bf16.msra.mxu0 %v517
    %721 = vmatprep.subr.bf16.mxu0 0
    %722 = vmatpush1.bf16.msra.mxu0 %v518
    %723 = vmatprep.subr.bf16.mxu0 0
    %724 = vmatpush1.bf16.msra.mxu0 %v519
    %725 = vmatprep.subr.bf16.mxu0 0
    %726 = vmatpush1.bf16.msra.mxu0 %v520
    %727 = vmatprep.subr.bf16.mxu0 0
    %728 = vmatpush1.bf16.msra.mxu0 %v521
    %729 = vmatprep.subr.bf16.mxu0 0
    %730 = vmatpush1.bf16.msra.mxu0 %v522
    %731 = vmatprep.subr.bf16.mxu0 0
    %732 = vmatpush1.bf16.msra.mxu0 %v523
    %733 = vmatprep.subr.bf16.mxu0 0
    %734 = vmatpush1.bf16.msra.mxu0 %v524
    %735 = vmatprep.subr.bf16.mxu0 0
    %736 = vmatpush1.bf16.msra.mxu0 %v525
    %737 = vmatprep.subr.bf16.mxu0 0
    %738 = vmatpush1.bf16.msra.mxu0 %v526
    %739 = vmatprep.subr.bf16.mxu0 0
    %740 = vmatpush1.bf16.msra.mxu0 %v527
    %741 = vmatprep.subr.bf16.mxu0 0
    %742 = vmatpush1.bf16.msra.mxu0 %v528
    %743 = vmatprep.subr.bf16.mxu0 0
    %744 = vmatpush1.bf16.msra.mxu0 %v529
    %745 = vmatprep.subr.bf16.mxu0 0
    %746 = vmatpush1.bf16.msra.mxu0 %v530
    %747 = vmatprep.mubr.bf16.mxu0 %v75
    %748 = vmatmul.mubr.bf16.gmra.mrb[0].mxu0 %v74
    %v749 = vpop.f32.mrb[0].mxu0
    %v750 = vadd.f32 %v710, %v749
    %v751 = vpop.f32.mrb[0].mxu0
    %v752 = vpop.f32.mrb[0].mxu0
    %v753 = vpop.f32.mrb[0].mxu0
    %754 = vdwg.mxu0
    %vm755 = vcmp.gt.f32.partialorder %v750, 0.0
    %v756 = vmul.f32 %v750, 0.1
    %v757 = vsel %vm755, %v750, %v756
    %v758 = vpack.c.bf16 %v757, %v757
    %v759 = vld [vmem:[%s3] sm:$0xf]
    %v760 = vld [vmem:[%s3 + $0x4] sm:$0xf]
    %v761 = vld [vmem:[%s3 + $0x8] sm:$0xf]
    %v762 = vld [vmem:[%s3 + $0xc] sm:$0xf]
    %v763 = vld [vmem:[%s3 + $0x10] sm:$0xf]
    %v764 = vld [vmem:[%s3 + $0x14] sm:$0xf]
    %v765 = vld [vmem:[%s3 + $0x18] sm:$0xf]
    %v766 = vld [vmem:[%s3 + $0x1c] sm:$0xf]
    %v767 = vld [vmem:[%s3 + $0x20] sm:$0xf]
    %v768 = vld [vmem:[%s3 + $0x24] sm:$0xf]
    %v769 = vld [vmem:[%s3 + $0x28] sm:$0xf]
    %v770 = vld [vmem:[%s3 + $0x2c] sm:$0xf]
    %v771 = vld [vmem:[%s3 + $0x30] sm:$0xf]
    %v772 = vld [vmem:[%s3 + $0x34] sm:$0xf]
    %v773 = vld [vmem:[%s3 + $0x38] sm:$0xf]
    %v774 = vld [vmem:[%s3 + $0x3c] sm:$0xf]
    %v775 = vld [vmem:[%s4] sm:$0x1]
    %v777 = vlaneseq
    %v778 = vshrl.u32 %v777, 7
    %v779 = vsub.s32 0, %v778
    %v780 = vrot.slane %v775, %v779
    %v798 = vunpack.c.l.b16 %v759
    %v799 = vunpack.c.l.b16 %v760
    %v800 = vunpack.c.l.b16 %v761
    %v801 = vunpack.c.l.b16 %v762
    %v802 = vunpack.c.l.b16 %v763
    %v803 = vunpack.c.l.b16 %v764
    %v804 = vunpack.c.l.b16 %v765
    %v805 = vunpack.c.l.b16 %v766
    %v806 = vunpack.c.l.b16 %v767
    %v807 = vunpack.c.l.b16 %v768
    %v808 = vunpack.c.l.b16 %v769
    %v809 = vunpack.c.l.b16 %v770
    %v810 = vunpack.c.l.b16 %v771
    %v811 = vunpack.c.l.b16 %v772
    %v812 = vunpack.c.l.b16 %v773
    %v813 = vunpack.c.l.b16 %v774
    %v814 = vpack.c.b16 %v799, %v798
    %v815 = vpack.c.b16 %v801, %v800
    %v816 = vpack.c.b16 %v803, %v802
    %v817 = vpack.c.b16 %v805, %v804
    %v818 = vpack.c.b16 %v807, %v806
    %v819 = vpack.c.b16 %v809, %v808
    %v820 = vpack.c.b16 %v811, %v810
    %v821 = vpack.c.b16 %v813, %v812
    %830 = vmatprep.subr.bf16.mxu0 0
    %831 = vmatpush1.bf16.msra.mxu0 %v814
    %832 = vmatprep.subr.bf16.mxu0 0
    %833 = vmatpush1.bf16.msra.mxu0 %v815
    %834 = vmatprep.subr.bf16.mxu0 0
    %835 = vmatpush1.bf16.msra.mxu0 %v816
    %836 = vmatprep.subr.bf16.mxu0 0
    %837 = vmatpush1.bf16.msra.mxu0 %v817
    %838 = vmatprep.subr.bf16.mxu0 0
    %839 = vmatpush1.bf16.msra.mxu0 %v818
    %840 = vmatprep.subr.bf16.mxu0 0
    %841 = vmatpush1.bf16.msra.mxu0 %v819
    %842 = vmatprep.subr.bf16.mxu0 0
    %843 = vmatpush1.bf16.msra.mxu0 %v820
    %844 = vmatprep.subr.bf16.mxu0 0
    %845 = vmatpush1.bf16.msra.mxu0 %v821
    %846 = vmatprep.subr.bf16.mxu0 0
    %847 = vmatpush1.bf16.msra.mxu0 0
    %848 = vmatprep.subr.bf16.mxu0 0
    %849 = vmatpush1.bf16.msra.mxu0 0
    %850 = vmatprep.subr.bf16.mxu0 0
    %851 = vmatpush1.bf16.msra.mxu0 0
    %852 = vmatprep.subr.bf16.mxu0 0
    %853 = vmatpush1.bf16.msra.mxu0 0
    %854 = vmatprep.subr.bf16.mxu0 0
    %855 = vmatpush1.bf16.msra.mxu0 0
    %856 = vmatprep.subr.bf16.mxu0 0
    %857 = vmatpush1.bf16.msra.mxu0 0
    %858 = vmatprep.subr.bf16.mxu0 0
    %859 = vmatpush1.bf16.msra.mxu0 0
    %860 = vmatprep.subr.bf16.mxu0 0
    %861 = vmatpush1.bf16.msra.mxu0 0
    %862 = vmatprep.mubr.bf16.mxu0 0
    %863 = vmatmul.mubr.bf16.gmra.mrb[0].mxu0 %v758
    %v864 = vpop.f32.mrb[0].mxu0
    %v865 = vadd.f32 %v780, %v864
    %v866 = vpop.f32.mrb[0].mxu0
    %v867 = vpop.f32.mrb[0].mxu0
    %v868 = vpop.f32.mrb[0].mxu0
    %869 = vdwg.mxu0
    %vm870 = vcmask 1041408
    %v871 = vsel %vm870, %v865, -inf
    %872 = vmax.xlane.f32.xlu0 %v871
    %v873 = vpop.xlane.xlu0 %872
    %v874 = vsub.f32 %v865, %v873
    %v875 = vmul.f32 %v874, 1.442695
    %v876 = vpow.pop %v875
    %v877 = vsel %vm870, %v876, 0.0
    %878 = vadd.xlane.f32.xlu0 %v877
    %v879 = vpop.xlane.xlu0 %878
    %v880 = vrcp.pop %v879
    %v881 = vmul.f32 %v876, %v880
    %vm882 = vcmask 74752
    %883 = vst.msk [vmem:[#allocation2] sm:$0x3] %vm882, %v881
    // Predicated region
    $region22: #{custom_mlp_forward.1} parent=1 // pred_check
      _
    $region23: #{custom_mlp_forward.1} parent=1 // pred_check_branch
      %885 = sbr.rel (0) target = $region25
    $region24: #{custom_mlp_forward.1} parent=1 // pred_region
      %s887 = ssub.s32 32, 32
      %888 = vsyncadd [#allocation3], %s887
      %s890 = sshll.u32 [#allocation2], 4
      %s891 = int_to_ptr.vmem [resolvable:$true] %s890
      %893 = dma.vmem_to_hbm [thread:$0]  %s891, 32, %s5, [#allocation3]
    $region25: #{custom_mlp_forward.1} parent=1 // pred_fallthru
      _
    // Predicated region
    $region26: #{custom_mlp_forward.1} parent=1 // pred_check
      _
    $region27: #{custom_mlp_forward.1} parent=1 // pred_check_branch
      %895 = sbr.rel (0) target = $region29
    $region28: #{custom_mlp_forward.1} parent=1 // pred_region
      %896 = dma.done [#allocation3], 32
    $region29: #{custom_mlp_forward.1} parent=1 // pred_fallthru
      _
    %897 = vsyncpa [#allocation3], 1

</llo_original>
